<compile_context>
chip_gen: v7x
topology: tpu7x:2x2x1
jax: 0.10.0
libtpu: 0.0.40
codegen_flags: <defaults>
</compile_context>

<pallas_src>
import functools

import jax
import jax.numpy as jnp
from jax import lax
from jax.experimental import pallas as pl
from jax.experimental.pallas import tpu as pltpu

HIDDEN = 150
N_LIN4 = 8

# Lane-friendly padded sizes (zero-padded columns feed ReLU(0)=0, so visible
# math is unchanged; the wrapper slices back to num_classes).
HID_PAD = 256     # 150 -> 256
COUT_PAD = 128    # num_classes=10 -> 128

# Below this batch size: one gridless call (everything whole-array in VMEM).
# At/above: batch-tiled grid (pipelined x/out DMA, megacore split on v7x).
GRID_BATCH_THRESHOLD = 1024
B_TILE = 512


# ----------------------------------------------------------------------------
# Fused kernel: the whole forward pass in one body, weights VMEM-resident.
# ----------------------------------------------------------------------------
def mynet_fused_kernel(x_ref, w1_ref, b1_ref, w4_ref, b4_ref, w10_ref, b10_ref,
                       o_ref):
    # relu(lin1(x)) — bf16 operands into the MXU, f32 accumulation.
    h = jnp.dot(x_ref[...].astype(jnp.bfloat16), w1_ref[...],
                preferred_element_type=jnp.float32) + b1_ref[...]
    h = jnp.maximum(h, 0.0)                                    # (Bt, HID_PAD) f32

    # 8 x relu(lin4(h)) — same bf16 weights every iteration, kept in VMEM/vregs.
    # TODO(synk): optionally latch w4 in the MXU weight registers across the 8
    # iterations via pltpu.matmul_push_rhs/matmul_acc_lhs/matmul_pop.
    w4 = w4_ref[...]
    b4 = jnp.broadcast_to(b4_ref[...], h.shape)                # hoisted once

    def lin4_step(_, h):
        y = jnp.dot(h.astype(jnp.bfloat16), w4,
                    preferred_element_type=jnp.float32) + b4
        return jnp.maximum(y, 0.0)

    h = lax.fori_loop(0, N_LIN4, lin4_step, h, unroll=True)

    # TODO(synk): nn.Dropout(0.25) is identity in inference mode; training-mode
    # stochastic masking (via pltpu.prng_random_bits) is not implemented here.

    # relu(lin10(h)) — lane-dense padded output store.
    y = jnp.dot(h.astype(jnp.bfloat16), w10_ref[...],
                preferred_element_type=jnp.float32) + b10_ref[...]
    o_ref[...] = jnp.maximum(y, 0.0).astype(o_ref.dtype)


def _cost_estimate(B, fin, hid_p, cout_p, params):
    flops = 2 * B * (fin * hid_p + N_LIN4 * hid_p * hid_p + hid_p * cout_p)
    bytes_accessed = (
        4 * B * fin                                             # x (f32)
        + sum(int(p.size) * p.dtype.itemsize for p in params.values())
        + 4 * B * cout_p                                        # out (f32)
    )
    return pl.CostEstimate(flops=flops, transcendentals=0,
                           bytes_accessed=bytes_accessed)


def mynet_forward_padded(params, x):
    """Single pallas_call. x: (B, num_features) f32 -> (B, COUT_PAD) f32."""
    B, fin = x.shape
    hid_p = params["w4"].shape[0]
    cout_p = params["w10"].shape[1]
    ce = _cost_estimate(B, fin, hid_p, cout_p, params)
    out_shape = jax.ShapeDtypeStruct((B, cout_p), jnp.float32)
    args = (x, params["w1"], params["b1"], params["w4"], params["b4"],
            params["w10"], params["b10"])

    if B < GRID_BATCH_THRESHOLD:
        # Gridless: whole arrays resident in VMEM (weights ~0.26 MB bf16).
        vmem = pl.BlockSpec(memory_space=pltpu.MemorySpace.VMEM)
        return pl.pallas_call(
            mynet_fused_kernel,
            out_shape=out_shape,
            in_specs=[vmem] * 7,
            out_specs=vmem,
            cost_estimate=ce,
        )(*args)

    # Large batch: tile the batch; weights use constant index_maps so they are
    # DMA'd once and stay resident; batch axis is "parallel" (v7x megacore).
    grid = (pl.cdiv(B, B_TILE),)
    in_specs = [
        pl.BlockSpec((B_TILE, fin), lambda i: (i, 0)),           # x
        pl.BlockSpec((fin, hid_p), lambda i: (0, 0)),            # w1
        pl.BlockSpec((1, hid_p), lambda i: (0, 0)),              # b1
        pl.BlockSpec((hid_p, hid_p), lambda i: (0, 0)),          # w4
        pl.BlockSpec((1, hid_p), lambda i: (0, 0)),              # b4
        pl.BlockSpec((hid_p, cout_p), lambda i: (0, 0)),         # w10
        pl.BlockSpec((1, cout_p), lambda i: (0, 0)),             # b10
    ]
    out_specs = pl.BlockSpec((B_TILE, cout_p), lambda i: (i, 0))
    return pl.pallas_call(
        mynet_fused_kernel,
        out_shape=out_shape,
        grid=grid,
        in_specs=in_specs,
        out_specs=out_specs,
        cost_estimate=ce,
        compiler_params=pltpu.CompilerParams(
            dimension_semantics=("parallel",)),
    )(*args)


@functools.partial(jax.jit, static_argnames=("num_classes",))
def mynet_forward(params, x, num_classes):
    """x: (B, num_features) f32 -> (B, num_classes) f32."""
    out_pad = mynet_forward_padded(params, x)
    return out_pad[:, :num_classes]


# ----------------------------------------------------------------------------
# Parameter construction (PyTorch-style init), stored pre-transposed, padded,
# weights in bf16 (biases stay f32).
# ----------------------------------------------------------------------------
def init_linear(key, fan_in, fan_out, fan_in_pad, fan_out_pad):
    kw, kb = jax.random.split(key)
    bound = 1.0 / jnp.sqrt(jnp.float32(fan_in))
    w = jax.random.uniform(kw, (fan_in, fan_out), jnp.float32, -bound, bound)
    b = jax.random.uniform(kb, (1, fan_out), jnp.float32, -bound, bound)
    # Zero padding: extra rows/cols contribute 0 and ReLU(0)=0, so semantics
    # in the visible columns are unchanged.
    w_pad = (jnp.zeros((fan_in_pad, fan_out_pad), jnp.float32)
             .at[:fan_in, :fan_out].set(w)).astype(jnp.bfloat16)
    b_pad = jnp.zeros((1, fan_out_pad), jnp.float32).at[:, :fan_out].set(b)
    return (w_pad, b_pad), (w, b)


def init_mynet_params(key, num_features, num_classes, hidden=HIDDEN):
    k1, k4, k10 = jax.random.split(key, 3)
    # w1 keeps its real fan_in (K=32 is already a multiple of the sublane tile).
    (w1p, b1p), (w1, b1) = init_linear(k1, num_features, hidden,
                                       num_features, HID_PAD)
    (w4p, b4p), (w4, b4) = init_linear(k4, hidden, hidden, HID_PAD, HID_PAD)
    (w10p, b10p), (w10, b10) = init_linear(k10, hidden, num_classes,
                                           HID_PAD, COUT_PAD)
    # lin2/lin3/lin5/lin6 and PReLU exist in __init__ but are unused in forward.
    padded = dict(w1=w1p, b1=b1p, w4=w4p, b4=b4p, w10=w10p, b10=b10p)
    reference = dict(w1=w1, b1=b1, w4=w4, b4=b4, w10=w10, b10=b10)
    return padded, reference


def mynet_reference(ref_params, x):
    """Pure-JAX f32 reference of the PyTorch forward (for verification)."""
    h = jnp.maximum(x @ ref_params["w1"] + ref_params["b1"], 0.0)
    for _ in range(N_LIN4):
        h = jnp.maximum(h @ ref_params["w4"] + ref_params["b4"], 0.0)
    # dropout: identity in eval mode
    return jnp.maximum(h @ ref_params["w10"] + ref_params["b10"], 0.0)


if __name__ == "__main__":
    num_features = 32
    num_classes = 10
    batch = 8

    key = jax.random.PRNGKey(0)
    k_params, k_x = jax.random.split(key)

    params, ref_params = init_mynet_params(k_params, num_features, num_classes)
    x = jax.random.normal(k_x, (batch, num_features), dtype=jnp.float32)

    out = mynet_forward(params, x, num_classes)
    jax.block_until_ready(out)

    assert out.shape == (batch, num_classes), out.shape
    assert out.dtype == jnp.float32

    expected = mynet_reference(ref_params, x)
    # bf16 operands through a 10-matmul chain: relax tolerance vs f32 reference.
    assert jnp.allclose(out, expected, rtol=5e-2, atol=5e-2), (
        float(jnp.max(jnp.abs(out - expected))))

    print("KERNEL_OK")
</pallas_src>

<mosaic_0001>
module attributes {stable_mosaic.version = 11 : i64} {
  func.func @mynet_fused_kernel(%arg0: memref<8x32xf32, #tpu.memory_space<vmem>>, %arg1: memref<32x256xbf16, #tpu.memory_space<vmem>>, %arg2: memref<1x256xf32, #tpu.memory_space<vmem>>, %arg3: memref<256x256xbf16, #tpu.memory_space<vmem>>, %arg4: memref<1x256xf32, #tpu.memory_space<vmem>>, %arg5: memref<256x128xbf16, #tpu.memory_space<vmem>>, %arg6: memref<1x128xf32, #tpu.memory_space<vmem>>, %arg7: memref<8x128xf32, #tpu.memory_space<vmem>>) attributes {dimension_semantics = [], scalar_prefetch = 0 : i64, scratch_operands = 0 : i64, tpu.core_type = #tpu.core_type<tc>} {
    %c0 = arith.constant 0 : index
    %c0_0 = arith.constant 0 : index
    %0 = vector.load %arg0[%c0, %c0_0] : memref<8x32xf32, #tpu.memory_space<vmem>>, vector<8x32xf32>
    %1 = arith.truncf %0 : vector<8x32xf32> to vector<8x32xbf16>
    %c0_1 = arith.constant 0 : index
    %c0_2 = arith.constant 0 : index
    %2 = vector.load %arg1[%c0_1, %c0_2] : memref<32x256xbf16, #tpu.memory_space<vmem>>, vector<32x256xbf16>
    %cst = arith.constant dense<0.000000e+00> : vector<8x256xf32>
    %3 = tpu.matmul %1, %2, %cst {dimension_numbers = #tpu.dot_dimension_numbers<[1], [0], [0], [1], [0, 0, 1, 1], [], []>} : vector<8x32xbf16>, vector<32x256xbf16>, vector<8x256xf32> -> vector<8x256xf32>
    %c0_3 = arith.constant 0 : index
    %c0_4 = arith.constant 0 : index
    %4 = vector.load %arg2[%c0_3, %c0_4] : memref<1x256xf32, #tpu.memory_space<vmem>>, vector<1x256xf32>
    %5 = vector.broadcast %4 : vector<1x256xf32> to vector<8x256xf32>
    %6 = arith.addf %3, %5 : vector<8x256xf32>
    %cst_5 = arith.constant 0.000000e+00 : f32
    %7 = vector.broadcast %cst_5 : f32 to vector<8x256xf32>
    %8 = arith.maximumf %6, %7 : vector<8x256xf32>
    %c0_6 = arith.constant 0 : index
    %c0_7 = arith.constant 0 : index
    %9 = vector.load %arg3[%c0_6, %c0_7] : memref<256x256xbf16, #tpu.memory_space<vmem>>, vector<256x256xbf16>
    %c0_8 = arith.constant 0 : index
    %c0_9 = arith.constant 0 : index
    %10 = vector.load %arg4[%c0_8, %c0_9] : memref<1x256xf32, #tpu.memory_space<vmem>>, vector<1x256xf32>
    %11 = vector.shape_cast %10 : vector<1x256xf32> to vector<1x256xf32>
    %12 = vector.broadcast %11 : vector<1x256xf32> to vector<8x256xf32>
    %c0_i32 = arith.constant 0 : i32
    %13 = arith.truncf %8 : vector<8x256xf32> to vector<8x256xbf16>
    %cst_10 = arith.constant dense<0.000000e+00> : vector<8x256xf32>
    %14 = tpu.matmul %13, %9, %cst_10 {dimension_numbers = #tpu.dot_dimension_numbers<[1], [0], [0], [1], [0, 0, 1, 1], [], []>} : vector<8x256xbf16>, vector<256x256xbf16>, vector<8x256xf32> -> vector<8x256xf32>
    %15 = arith.addf %14, %12 : vector<8x256xf32>
    %cst_11 = arith.constant 0.000000e+00 : f32
    %16 = vector.broadcast %cst_11 : f32 to vector<8x256xf32>
    %17 = arith.maximumf %15, %16 : vector<8x256xf32>
    %c1_i32 = arith.constant 1 : i32
    %18 = arith.truncf %17 : vector<8x256xf32> to vector<8x256xbf16>
    %cst_12 = arith.constant dense<0.000000e+00> : vector<8x256xf32>
    %19 = tpu.matmul %18, %9, %cst_12 {dimension_numbers = #tpu.dot_dimension_numbers<[1], [0], [0], [1], [0, 0, 1, 1], [], []>} : vector<8x256xbf16>, vector<256x256xbf16>, vector<8x256xf32> -> vector<8x256xf32>
    %20 = arith.addf %19, %12 : vector<8x256xf32>
    %cst_13 = arith.constant 0.000000e+00 : f32
    %21 = vector.broadcast %cst_13 : f32 to vector<8x256xf32>
    %22 = arith.maximumf %20, %21 : vector<8x256xf32>
    %c2_i32 = arith.constant 2 : i32
    %23 = arith.truncf %22 : vector<8x256xf32> to vector<8x256xbf16>
    %cst_14 = arith.constant dense<0.000000e+00> : vector<8x256xf32>
    %24 = tpu.matmul %23, %9, %cst_14 {dimension_numbers = #tpu.dot_dimension_numbers<[1], [0], [0], [1], [0, 0, 1, 1], [], []>} : vector<8x256xbf16>, vector<256x256xbf16>, vector<8x256xf32> -> vector<8x256xf32>
    %25 = arith.addf %24, %12 : vector<8x256xf32>
    %cst_15 = arith.constant 0.000000e+00 : f32
    %26 = vector.broadcast %cst_15 : f32 to vector<8x256xf32>
    %27 = arith.maximumf %25, %26 : vector<8x256xf32>
    %c3_i32 = arith.constant 3 : i32
    %28 = arith.truncf %27 : vector<8x256xf32> to vector<8x256xbf16>
    %cst_16 = arith.constant dense<0.000000e+00> : vector<8x256xf32>
    %29 = tpu.matmul %28, %9, %cst_16 {dimension_numbers = #tpu.dot_dimension_numbers<[1], [0], [0], [1], [0, 0, 1, 1], [], []>} : vector<8x256xbf16>, vector<256x256xbf16>, vector<8x256xf32> -> vector<8x256xf32>
    %30 = arith.addf %29, %12 : vector<8x256xf32>
    %cst_17 = arith.constant 0.000000e+00 : f32
    %31 = vector.broadcast %cst_17 : f32 to vector<8x256xf32>
    %32 = arith.maximumf %30, %31 : vector<8x256xf32>
    %c4_i32 = arith.constant 4 : i32
    %33 = arith.truncf %32 : vector<8x256xf32> to vector<8x256xbf16>
    %cst_18 = arith.constant dense<0.000000e+00> : vector<8x256xf32>
    %34 = tpu.matmul %33, %9, %cst_18 {dimension_numbers = #tpu.dot_dimension_numbers<[1], [0], [0], [1], [0, 0, 1, 1], [], []>} : vector<8x256xbf16>, vector<256x256xbf16>, vector<8x256xf32> -> vector<8x256xf32>
    %35 = arith.addf %34, %12 : vector<8x256xf32>
    %cst_19 = arith.constant 0.000000e+00 : f32
    %36 = vector.broadcast %cst_19 : f32 to vector<8x256xf32>
    %37 = arith.maximumf %35, %36 : vector<8x256xf32>
    %c5_i32 = arith.constant 5 : i32
    %38 = arith.truncf %37 : vector<8x256xf32> to vector<8x256xbf16>
    %cst_20 = arith.constant dense<0.000000e+00> : vector<8x256xf32>
    %39 = tpu.matmul %38, %9, %cst_20 {dimension_numbers = #tpu.dot_dimension_numbers<[1], [0], [0], [1], [0, 0, 1, 1], [], []>} : vector<8x256xbf16>, vector<256x256xbf16>, vector<8x256xf32> -> vector<8x256xf32>
    %40 = arith.addf %39, %12 : vector<8x256xf32>
    %cst_21 = arith.constant 0.000000e+00 : f32
    %41 = vector.broadcast %cst_21 : f32 to vector<8x256xf32>
    %42 = arith.maximumf %40, %41 : vector<8x256xf32>
    %c6_i32 = arith.constant 6 : i32
    %43 = arith.truncf %42 : vector<8x256xf32> to vector<8x256xbf16>
    %cst_22 = arith.constant dense<0.000000e+00> : vector<8x256xf32>
    %44 = tpu.matmul %43, %9, %cst_22 {dimension_numbers = #tpu.dot_dimension_numbers<[1], [0], [0], [1], [0, 0, 1, 1], [], []>} : vector<8x256xbf16>, vector<256x256xbf16>, vector<8x256xf32> -> vector<8x256xf32>
    %45 = arith.addf %44, %12 : vector<8x256xf32>
    %cst_23 = arith.constant 0.000000e+00 : f32
    %46 = vector.broadcast %cst_23 : f32 to vector<8x256xf32>
    %47 = arith.maximumf %45, %46 : vector<8x256xf32>
    %c7_i32 = arith.constant 7 : i32
    %48 = arith.truncf %47 : vector<8x256xf32> to vector<8x256xbf16>
    %cst_24 = arith.constant dense<0.000000e+00> : vector<8x256xf32>
    %49 = tpu.matmul %48, %9, %cst_24 {dimension_numbers = #tpu.dot_dimension_numbers<[1], [0], [0], [1], [0, 0, 1, 1], [], []>} : vector<8x256xbf16>, vector<256x256xbf16>, vector<8x256xf32> -> vector<8x256xf32>
    %50 = arith.addf %49, %12 : vector<8x256xf32>
    %cst_25 = arith.constant 0.000000e+00 : f32
    %51 = vector.broadcast %cst_25 : f32 to vector<8x256xf32>
    %52 = arith.maximumf %50, %51 : vector<8x256xf32>
    %53 = arith.truncf %52 : vector<8x256xf32> to vector<8x256xbf16>
    %c0_26 = arith.constant 0 : index
    %c0_27 = arith.constant 0 : index
    %54 = vector.load %arg5[%c0_26, %c0_27] : memref<256x128xbf16, #tpu.memory_space<vmem>>, vector<256x128xbf16>
    %cst_28 = arith.constant dense<0.000000e+00> : vector<8x128xf32>
    %55 = tpu.matmul %53, %54, %cst_28 {dimension_numbers = #tpu.dot_dimension_numbers<[1], [0], [0], [1], [0, 0, 1, 1], [], []>} : vector<8x256xbf16>, vector<256x128xbf16>, vector<8x128xf32> -> vector<8x128xf32>
    %c0_29 = arith.constant 0 : index
    %c0_30 = arith.constant 0 : index
    %56 = vector.load %arg6[%c0_29, %c0_30] : memref<1x128xf32, #tpu.memory_space<vmem>>, vector<1x128xf32>
    %57 = vector.broadcast %56 : vector<1x128xf32> to vector<8x128xf32>
    %58 = arith.addf %55, %57 : vector<8x128xf32>
    %cst_31 = arith.constant 0.000000e+00 : f32
    %59 = vector.broadcast %cst_31 : f32 to vector<8x128xf32>
    %60 = arith.maximumf %58, %59 : vector<8x128xf32>
    %c0_32 = arith.constant 0 : index
    %c0_33 = arith.constant 0 : index
    %61 = vector.load %arg7[%c0_32, %c0_33] : memref<8x128xf32, #tpu.memory_space<vmem>>, vector<8x128xf32>
    tpu.vector_store %arg7[%c0_32, %c0_33], %60 {strides = array<i32>} : memref<8x128xf32, #tpu.memory_space<vmem>>, vector<8x128xf32>,
    return
  }
}

</mosaic_0001>

<llo_original>
// kernel: mynet_forward.1
$region0: #{mynet_forward.1}
  #allocation0 [shape = 'u32[]', space=smem, size = 0x4, offset = 0x4, fixed_abs, tag = 'smem constant byte address 0x4 - core index']
  #allocation1 [shape = 'u32[144,128]{1,0:T(1,128)}', space=vmem, size = 0x12000, scoped, tag = 'internal scratch']
  %s0 = inlined_call_operand.vmem [shape: f32[8,32], index: 0, kind: input, shape index: {}]
  %s1 = inlined_call_operand.hbm [shape: bf16[32,256], index: 1, kind: input, shape index: {}]
  %s2 = inlined_call_operand.hbm [shape: f32[1,256], index: 2, kind: input, shape index: {}]
  %s3 = inlined_call_operand.hbm [shape: bf16[256,256], index: 3, kind: input, shape index: {}]
  %s4 = inlined_call_operand.vmem [shape: f32[1,256], index: 4, kind: input, shape index: {}]
  %s5 = inlined_call_operand.hbm [shape: bf16[256,128], index: 5, kind: input, shape index: {}]
  %s6 = inlined_call_operand.vmem [shape: f32[1,128], index: 6, kind: input, shape index: {}]
  %s7 = inlined_call_operand.hbm [shape: f32[8,128], index: 7, kind: output, shape index: {}]
  %s8 = sld [smem:[#allocation0]]
  $region54: #{mynet_forward.1} parent=0
    _
  %s10 = ssub.s32 1, %s8
  %s11 = scalar_select 0, %s10, %s8
  $region1: #{mynet_forward.1} parent=0
    #allocation2 [shape = 'u8[16384]{0}', space=vmem, size = 0x4000, scoped, tag = 'input window, operand 1, single buffered']
    #allocation3 [shape = 's32[1]{0}', space=sflag, size = 0x4, scoped, tag = 'scoped memory for mynet_forward.1']
    #allocation4 [shape = 's32[1]{0}', space=sflag, size = 0x4, scoped, tag = 'scoped memory for mynet_forward.1']
    #allocation5 [shape = 'u8[1024]{0}', space=vmem, size = 0x400, scoped, tag = 'input window, operand 2, single buffered']
    #allocation6 [shape = 's32[1]{0}', space=sflag, size = 0x4, scoped, tag = 'scoped memory for mynet_forward.1']
    #allocation7 [shape = 'u8[131072]{0}', space=vmem, size = 0x20000, scoped, tag = 'input window, operand 3, single buffered']
    #allocation8 [shape = 'u8[65536]{0}', space=vmem, size = 0x10000, scoped, tag = 'input window, operand 5, single buffered']
    #allocation9 [shape = 's32[1]{0}', space=sflag, size = 0x4, scoped, tag = 'scoped memory for mynet_forward.1']
    #allocation10 [shape = 'u8[4096]{0}', space=vmem, size = 0x1000, scoped, tag = 'output window, operand 0, single buffered']
    %12 = vsyncpa [#allocation3], 0
    %13 = vsyncpa [#allocation6], 0
    %14 = vsyncpa [#allocation9], 0
    %15 = vsyncpa [#allocation4], 0
    // Predicated region
    $region2: #{mynet_forward.1} parent=1 // pred_check
      _
    $region3: #{mynet_forward.1} parent=1 // pred_check_branch
      %17 = sbr.rel (0) target = $region5
    $region4: #{mynet_forward.1} parent=1 // pred_region
      _
    $region5: #{mynet_forward.1} parent=1 // pred_fallthru
      _
    // Predicated region
    $region6: #{mynet_forward.1} parent=1 // pred_check
      _
    $region7: #{mynet_forward.1} parent=1 // pred_check_branch
      %19 = sbr.rel (0) target = $region9
    $region8: #{mynet_forward.1} parent=1 // pred_region
      %s21 = ssub.s32 512, 512
      %22 = vsyncadd [#allocation3], %s21
      %s23 = sshll.u32 [#allocation2], 4
      %s24 = int_to_ptr.vmem [resolvable:$true] %s23
      %29 = dma.hbm_to_vmem [thread:$0]  %s1, 512, %s24, [#allocation3], 128, 128, 8
    $region9: #{mynet_forward.1} parent=1 // pred_fallthru
      _
    // Predicated region
    $region10: #{mynet_forward.1} parent=1 // pred_check
      _
    $region11: #{mynet_forward.1} parent=1 // pred_check_branch
      %31 = sbr.rel (0) target = $region13
    $region12: #{mynet_forward.1} parent=1 // pred_region
      %s33 = ssub.s32 32, 32
      %34 = vsyncadd [#allocation6], %s33
      %s36 = sshll.u32 [#allocation5], 4
      %s37 = int_to_ptr.vmem [resolvable:$true] %s36
      %39 = dma.hbm_to_vmem [thread:$0]  %s2, 32, %s37, [#allocation6]
    $region13: #{mynet_forward.1} parent=1 // pred_fallthru
      _
    // Predicated region
    $region14: #{mynet_forward.1} parent=1 // pred_check
      _
    $region15: #{mynet_forward.1} parent=1 // pred_check_branch
      %41 = sbr.rel (0) target = $region17
    $region16: #{mynet_forward.1} parent=1 // pred_region
      %s43 = ssub.s32 4096, 4096
      %44 = vsyncadd [#allocation6], %s43
      %s45 = sshll.u32 [#allocation7], 4
      %s46 = int_to_ptr.vmem [resolvable:$true] %s45
      %51 = dma.hbm_to_vmem [thread:$0]  %s3, 4096, %s46, [#allocation6], 128, 128, 8
    $region17: #{mynet_forward.1} parent=1 // pred_fallthru
      _
    // Predicated region
    $region18: #{mynet_forward.1} parent=1 // pred_check
      _
    $region19: #{mynet_forward.1} parent=1 // pred_check_branch
      %53 = sbr.rel (0) target = $region21
    $region20: #{mynet_forward.1} parent=1 // pred_region
      _
    $region21: #{mynet_forward.1} parent=1 // pred_fallthru
      _
    // Predicated region
    $region22: #{mynet_forward.1} parent=1 // pred_check
      _
    $region23: #{mynet_forward.1} parent=1 // pred_check_branch
      %55 = sbr.rel (0) target = $region25
    $region24: #{mynet_forward.1} parent=1 // pred_region
      %s57 = ssub.s32 2048, 2048
      %58 = vsyncadd [#allocation9], %s57
      %s59 = sshll.u32 [#allocation8], 4
      %s60 = int_to_ptr.vmem [resolvable:$true] %s59
      %65 = dma.hbm_to_vmem [thread:$0]  %s5, 2048, %s60, [#allocation9], 64, 64, 4
    $region25: #{mynet_forward.1} parent=1 // pred_fallthru
      _
    // Predicated region
    $region26: #{mynet_forward.1} parent=1 // pred_check
      _
    $region27: #{mynet_forward.1} parent=1 // pred_check_branch
      %67 = sbr.rel (0) target = $region29
    $region28: #{mynet_forward.1} parent=1 // pred_region
      _
    $region29: #{mynet_forward.1} parent=1 // pred_fallthru
      _
    // Predicated region
    $region30: #{mynet_forward.1} parent=1 // pred_check
      _
    $region31: #{mynet_forward.1} parent=1 // pred_check_branch
      %69 = sbr.rel (0) target = $region33
    $region32: #{mynet_forward.1} parent=1 // pred_region
      %70 = dma.done [#allocation3], 512
    $region33: #{mynet_forward.1} parent=1 // pred_fallthru
      _
    // Predicated region
    $region34: #{mynet_forward.1} parent=1 // pred_check
      _
    $region35: #{mynet_forward.1} parent=1 // pred_check_branch
      %72 = sbr.rel (0) target = $region37
    $region36: #{mynet_forward.1} parent=1 // pred_region
      %73 = dma.done [#allocation6], 32
    $region37: #{mynet_forward.1} parent=1 // pred_fallthru
      _
    // Predicated region
    $region38: #{mynet_forward.1} parent=1 // pred_check
      _
    $region39: #{mynet_forward.1} parent=1 // pred_check_branch
      %75 = sbr.rel (0) target = $region41
    $region40: #{mynet_forward.1} parent=1 // pred_region
      %76 = dma.done [#allocation6], 4096
    $region41: #{mynet_forward.1} parent=1 // pred_fallthru
      _
    // Predicated region
    $region42: #{mynet_forward.1} parent=1 // pred_check
      _
    $region43: #{mynet_forward.1} parent=1 // pred_check_branch
      %78 = sbr.rel (0) target = $region45
    $region44: #{mynet_forward.1} parent=1 // pred_region
      %79 = dma.done [#allocation9], 2048
    $region45: #{mynet_forward.1} parent=1 // pred_fallthru
      _
    %v81 = vld [vmem:[%s0] sm:$0xff]
    %v82 = vpack.c.bf16 %v81, %v81
    %v83 = vld [vmem:[#allocation2] sm:$0xff]
    %v84 = vld [vmem:[#allocation2 + $0x8] sm:$0xff]
    %v85 = vld [vmem:[#allocation2 + $0x10] sm:$0xff]
    %v86 = vld [vmem:[#allocation2 + $0x18] sm:$0xff]
    %v87 = vld [vmem:[#allocation5] sm:$0x3]
    %v89 = vlaneseq
    %v90 = vshrl.u32 %v89, 7
    %v91 = vsub.s32 0, %v90
    %v92 = vrot.slane %v87, %v91
    %v93 = vlaneseq
    %v94 = vshrl.u32 %v93, 7
    %v95 = vsub.s32 1, %v94
    %v96 = vrot.slane %v87, %v95
    %v103 = vunpack.c.l.b16 %v83
    %v104 = vunpack.c.h.b16 %v83
    %v105 = vunpack.c.l.b16 %v84
    %v106 = vunpack.c.h.b16 %v84
    %v107 = vunpack.c.l.b16 %v85
    %v108 = vunpack.c.h.b16 %v85
    %v109 = vunpack.c.l.b16 %v86
    %v110 = vunpack.c.h.b16 %v86
    %v111 = vpack.c.b16 %v105, %v103
    %v112 = vpack.c.b16 %v106, %v104
    %v113 = vpack.c.b16 %v109, %v107
    %v114 = vpack.c.b16 %v110, %v108
    %vm119 = vcmask 261120
    %v121 = vsel %vm119, %v82, 0
    %123 = vmatprep.subr.bf16.mxu0 %v112
    %124 = vmatpush1.bf16.msra.mxu0 %v111
    %125 = vmatprep.subr.bf16.mxu0 %v114
    %126 = vmatpush1.bf16.msra.mxu0 %v113
    %127 = vmatprep.subr.bf16.mxu0 0
    %128 = vmatpush1.bf16.msra.mxu0 0
    %129 = vmatprep.subr.bf16.mxu0 0
    %130 = vmatpush1.bf16.msra.mxu0 0
    %131 = vmatprep.subr.bf16.mxu0 0
    %132 = vmatpush1.bf16.msra.mxu0 0
    %133 = vmatprep.subr.bf16.mxu0 0
    %134 = vmatpush1.bf16.msra.mxu0 0
    %135 = vmatprep.subr.bf16.mxu0 0
    %136 = vmatpush1.bf16.msra.mxu0 0
    %137 = vmatprep.subr.bf16.mxu0 0
    %138 = vmatpush1.bf16.msra.mxu0 0
    %139 = vmatprep.subr.bf16.mxu0 0
    %140 = vmatpush1.bf16.msra.mxu0 0
    %141 = vmatprep.subr.bf16.mxu0 0
    %142 = vmatpush1.bf16.msra.mxu0 0
    %143 = vmatprep.subr.bf16.mxu0 0
    %144 = vmatpush1.bf16.msra.mxu0 0
    %145 = vmatprep.subr.bf16.mxu0 0
    %146 = vmatpush1.bf16.msra.mxu0 0
    %147 = vmatprep.subr.bf16.mxu0 0
    %148 = vmatpush1.bf16.msra.mxu0 0
    %149 = vmatprep.subr.bf16.mxu0 0
    %150 = vmatpush1.bf16.msra.mxu0 0
    %151 = vmatprep.subr.bf16.mxu0 0
    %152 = vmatpush1.bf16.msra.mxu0 0
    %153 = vmatprep.subr.bf16.mxu0 0
    %154 = vmatpush1.bf16.msra.mxu0 0
    %155 = vmatprep.mubr.bf16.mxu0 0
    %156 = vmatmul.mubr.bf16.gmra.mrb[0].mxu0 %v121
    %v157 = vpop.f32.mrb[0].mxu0
    %v158 = vadd.f32 %v92, %v157
    %v159 = vpop.f32.mrb[0].mxu0
    %v160 = vadd.f32 %v96, %v159
    %v161 = vpop.f32.mrb[0].mxu0
    %v162 = vpop.f32.mrb[0].mxu0
    %163 = vdwg.mxu0
    %v164 = vmax.f32 %v158, 0.0
    %v165 = vmax.f32 %v160, 0.0
    %v166 = vld [vmem:[#allocation7] sm:$0xff]
    %v167 = vld [vmem:[#allocation7 + $0x8] sm:$0xff]
    %v168 = vld [vmem:[#allocation7 + $0x10] sm:$0xff]
    %v169 = vld [vmem:[#allocation7 + $0x18] sm:$0xff]
    %v170 = vld [vmem:[#allocation7 + $0x20] sm:$0xff]
    %v171 = vld [vmem:[#allocation7 + $0x28] sm:$0xff]
    %v172 = vld [vmem:[#allocation7 + $0x30] sm:$0xff]
    %v173 = vld [vmem:[#allocation7 + $0x38] sm:$0xff]
    %v174 = vld [vmem:[#allocation7 + $0x40] sm:$0xff]
    %v175 = vld [vmem:[#allocation7 + $0x48] sm:$0xff]
    %v176 = vld [vmem:[#allocation7 + $0x50] sm:$0xff]
    %v177 = vld [vmem:[#allocation7 + $0x58] sm:$0xff]
    %v178 = vld [vmem:[#allocation7 + $0x60] sm:$0xff]
    %v179 = vld [vmem:[#allocation7 + $0x68] sm:$0xff]
    %v180 = vld [vmem:[#allocation7 + $0x70] sm:$0xff]
    %v181 = vld [vmem:[#allocation7 + $0x78] sm:$0xff]
    %v182 = vld [vmem:[#allocation7 + $0x80] sm:$0xff]
    %v183 = vld [vmem:[#allocation7 + $0x88] sm:$0xff]
    %v184 = vld [vmem:[#allocation7 + $0x90] sm:$0xff]
    %v185 = vld [vmem:[#allocation7 + $0x98] sm:$0xff]
    %v186 = vld [vmem:[#allocation7 + $0xa0] sm:$0xff]
    %v187 = vld [vmem:[#allocation7 + $0xa8] sm:$0xff]
    %v188 = vld [vmem:[#allocation7 + $0xb0] sm:$0xff]
    %v189 = vld [vmem:[#allocation7 + $0xb8] sm:$0xff]
    %v190 = vld [vmem:[#allocation7 + $0xc0] sm:$0xff]
    %v191 = vld [vmem:[#allocation7 + $0xc8] sm:$0xff]
    %v192 = vld [vmem:[#allocation7 + $0xd0] sm:$0xff]
    %v193 = vld [vmem:[#allocation7 + $0xd8] sm:$0xff]
    %v194 = vld [vmem:[#allocation7 + $0xe0] sm:$0xff]
    %v195 = vld [vmem:[#allocation7 + $0xe8] sm:$0xff]
    %v196 = vld [vmem:[#allocation7 + $0xf0] sm:$0xff]
    %v197 = vld [vmem:[#allocation7 + $0xf8] sm:$0xff]
    %v198 = vld [vmem:[%s4] sm:$0x3]
    %v200 = vlaneseq
    %v201 = vshrl.u32 %v200, 7
    %v202 = vsub.s32 0, %v201
    %v203 = vrot.slane %v198, %v202
    %v204 = vlaneseq
    %v205 = vshrl.u32 %v204, 7
    %v206 = vsub.s32 1, %v205
    %v207 = vrot.slane %v198, %v206
    %v210 = vpack.c.bf16 %v164, %v164
    %v211 = vpack.c.bf16 %v165, %v165
    %v244 = vunpack.c.l.b16 %v166
    %v245 = vunpack.c.h.b16 %v166
    %v246 = vunpack.c.l.b16 %v167
    %v247 = vunpack.c.h.b16 %v167
    %v248 = vunpack.c.l.b16 %v168
    %v249 = vunpack.c.h.b16 %v168
    %v250 = vunpack.c.l.b16 %v169
    %v251 = vunpack.c.h.b16 %v169
    %v252 = vunpack.c.l.b16 %v170
    %v253 = vunpack.c.h.b16 %v170
    %v254 = vunpack.c.l.b16 %v171
    %v255 = vunpack.c.h.b16 %v171
    %v256 = vunpack.c.l.b16 %v172
    %v257 = vunpack.c.h.b16 %v172
    %v258 = vunpack.c.l.b16 %v173
    %v259 = vunpack.c.h.b16 %v173
    %v260 = vunpack.c.l.b16 %v174
    %v261 = vunpack.c.h.b16 %v174
    %v262 = vunpack.c.l.b16 %v175
    %v263 = vunpack.c.h.b16 %v175
    %v264 = vunpack.c.l.b16 %v176
    %v265 = vunpack.c.h.b16 %v176
    %v266 = vunpack.c.l.b16 %v177
    %v267 = vunpack.c.h.b16 %v177
    %v268 = vunpack.c.l.b16 %v178
    %v269 = vunpack.c.h.b16 %v178
    %v270 = vunpack.c.l.b16 %v179
    %v271 = vunpack.c.h.b16 %v179
    %v272 = vunpack.c.l.b16 %v180
    %v273 = vunpack.c.h.b16 %v180
    %v274 = vunpack.c.l.b16 %v181
    %v275 = vunpack.c.h.b16 %v181
    %v276 = vunpack.c.l.b16 %v182
    %v277 = vunpack.c.h.b16 %v182
    %v278 = vunpack.c.l.b16 %v183
    %v279 = vunpack.c.h.b16 %v183
    %v280 = vunpack.c.l.b16 %v184
    %v281 = vunpack.c.h.b16 %v184
    %v282 = vunpack.c.l.b16 %v185
    %v283 = vunpack.c.h.b16 %v185
    %v284 = vunpack.c.l.b16 %v186
    %v285 = vunpack.c.h.b16 %v186
    %v286 = vunpack.c.l.b16 %v187
    %v287 = vunpack.c.h.b16 %v187
    %v288 = vunpack.c.l.b16 %v188
    %v289 = vunpack.c.h.b16 %v188
    %v290 = vunpack.c.l.b16 %v189
    %v291 = vunpack.c.h.b16 %v189
    %v292 = vunpack.c.l.b16 %v190
    %v293 = vunpack.c.h.b16 %v190
    %v294 = vunpack.c.l.b16 %v191
    %v295 = vunpack.c.h.b16 %v191
    %v296 = vunpack.c.l.b16 %v192
    %v297 = vunpack.c.h.b16 %v192
    %v298 = vunpack.c.l.b16 %v193
    %v299 = vunpack.c.h.b16 %v193
    %v300 = vunpack.c.l.b16 %v194
    %v301 = vunpack.c.h.b16 %v194
    %v302 = vunpack.c.l.b16 %v195
    %v303 = vunpack.c.h.b16 %v195
    %v304 = vunpack.c.l.b16 %v196
    %v305 = vunpack.c.h.b16 %v196
    %v306 = vunpack.c.l.b16 %v197
    %v307 = vunpack.c.h.b16 %v197
    %v308 = vpack.c.b16 %v246, %v244
    %v309 = vpack.c.b16 %v247, %v245
    %v310 = vpack.c.b16 %v250, %v248
    %v311 = vpack.c.b16 %v251, %v249
    %v312 = vpack.c.b16 %v254, %v252
    %v313 = vpack.c.b16 %v255, %v253
    %v314 = vpack.c.b16 %v258, %v256
    %v315 = vpack.c.b16 %v259, %v257
    %v316 = vpack.c.b16 %v262, %v260
    %v317 = vpack.c.b16 %v263, %v261
    %v318 = vpack.c.b16 %v266, %v264
    %v319 = vpack.c.b16 %v267, %v265
    %v320 = vpack.c.b16 %v270, %v268
    %v321 = vpack.c.b16 %v271, %v269
    %v322 = vpack.c.b16 %v274, %v272
    %v323 = vpack.c.b16 %v275, %v273
    %v324 = vpack.c.b16 %v278, %v276
    %v325 = vpack.c.b16 %v279, %v277
    %v326 = vpack.c.b16 %v282, %v280
    %v327 = vpack.c.b16 %v283, %v281
    %v328 = vpack.c.b16 %v286, %v284
    %v329 = vpack.c.b16 %v287, %v285
    %v330 = vpack.c.b16 %v290, %v288
    %v331 = vpack.c.b16 %v291, %v289
    %v332 = vpack.c.b16 %v294, %v292
    %v333 = vpack.c.b16 %v295, %v293
    %v334 = vpack.c.b16 %v298, %v296
    %v335 = vpack.c.b16 %v299, %v297
    %v336 = vpack.c.b16 %v302, %v300
    %v337 = vpack.c.b16 %v303, %v301
    %v338 = vpack.c.b16 %v306, %v304
    %v339 = vpack.c.b16 %v307, %v305
    %372 = vmatprep.subr.bf16.mxu0 %v309
    %373 = vmatpush1.bf16.msra.mxu0 %v308
    %374 = vmatprep.subr.bf16.mxu0 %v311
    %375 = vmatpush1.bf16.msra.mxu0 %v310
    %376 = vmatprep.subr.bf16.mxu0 %v313
    %377 = vmatpush1.bf16.msra.mxu0 %v312
    %378 = vmatprep.subr.bf16.mxu0 %v315
    %379 = vmatpush1.bf16.msra.mxu0 %v314
    %380 = vmatprep.subr.bf16.mxu0 %v317
    %381 = vmatpush1.bf16.msra.mxu0 %v316
    %382 = vmatprep.subr.bf16.mxu0 %v319
    %383 = vmatpush1.bf16.msra.mxu0 %v318
    %384 = vmatprep.subr.bf16.mxu0 %v321
    %385 = vmatpush1.bf16.msra.mxu0 %v320
    %386 = vmatprep.subr.bf16.mxu0 %v323
    %387 = vmatpush1.bf16.msra.mxu0 %v322
    %388 = vmatprep.subr.bf16.mxu0 %v325
    %389 = vmatpush1.bf16.msra.mxu0 %v324
    %390 = vmatprep.subr.bf16.mxu0 %v327
    %391 = vmatpush1.bf16.msra.mxu0 %v326
    %392 = vmatprep.subr.bf16.mxu0 %v329
    %393 = vmatpush1.bf16.msra.mxu0 %v328
    %394 = vmatprep.subr.bf16.mxu0 %v331
    %395 = vmatpush1.bf16.msra.mxu0 %v330
    %396 = vmatprep.subr.bf16.mxu0 %v333
    %397 = vmatpush1.bf16.msra.mxu0 %v332
    %398 = vmatprep.subr.bf16.mxu0 %v335
    %399 = vmatpush1.bf16.msra.mxu0 %v334
    %400 = vmatprep.subr.bf16.mxu0 %v337
    %401 = vmatpush1.bf16.msra.mxu0 %v336
    %402 = vmatprep.subr.bf16.mxu0 %v339
    %403 = vmatpush1.bf16.msra.mxu0 %v338
    %404 = vmatprep.mubr.bf16.mxu0 %v211
    %405 = vmatmul.mubr.bf16.gmra.mrb[0].mxu0 %v210
    %v406 = vpop.f32.mrb[0].mxu0
    %v407 = vadd.f32 %v203, %v406
    %v408 = vpop.f32.mrb[0].mxu0
    %v409 = vadd.f32 %v207, %v408
    %v410 = vpop.f32.mrb[0].mxu0
    %v411 = vpop.f32.mrb[0].mxu0
    %412 = vdwg.mxu0
    %v413 = vmax.f32 %v407, 0.0
    %v414 = vmax.f32 %v409, 0.0
    %v415 = vpack.c.bf16 %v413, %v413
    %v416 = vpack.c.bf16 %v414, %v414
    %417 = vmatprep.subr.bf16.mxu0 %v309
    %418 = vmatpush1.bf16.msra.mxu0 %v308
    %419 = vmatprep.subr.bf16.mxu0 %v311
    %420 = vmatpush1.bf16.msra.mxu0 %v310
    %421 = vmatprep.subr.bf16.mxu0 %v313
    %422 = vmatpush1.bf16.msra.mxu0 %v312
    %423 = vmatprep.subr.bf16.mxu0 %v315
    %424 = vmatpush1.bf16.msra.mxu0 %v314
    %425 = vmatprep.subr.bf16.mxu0 %v317
    %426 = vmatpush1.bf16.msra.mxu0 %v316
    %427 = vmatprep.subr.bf16.mxu0 %v319
    %428 = vmatpush1.bf16.msra.mxu0 %v318
    %429 = vmatprep.subr.bf16.mxu0 %v321
    %430 = vmatpush1.bf16.msra.mxu0 %v320
    %431 = vmatprep.subr.bf16.mxu0 %v323
    %432 = vmatpush1.bf16.msra.mxu0 %v322
    %433 = vmatprep.subr.bf16.mxu0 %v325
    %434 = vmatpush1.bf16.msra.mxu0 %v324
    %435 = vmatprep.subr.bf16.mxu0 %v327
    %436 = vmatpush1.bf16.msra.mxu0 %v326
    %437 = vmatprep.subr.bf16.mxu0 %v329
    %438 = vmatpush1.bf16.msra.mxu0 %v328
    %439 = vmatprep.subr.bf16.mxu0 %v331
    %440 = vmatpush1.bf16.msra.mxu0 %v330
    %441 = vmatprep.subr.bf16.mxu0 %v333
    %442 = vmatpush1.bf16.msra.mxu0 %v332
    %443 = vmatprep.subr.bf16.mxu0 %v335
    %444 = vmatpush1.bf16.msra.mxu0 %v334
    %445 = vmatprep.subr.bf16.mxu0 %v337
    %446 = vmatpush1.bf16.msra.mxu0 %v336
    %447 = vmatprep.subr.bf16.mxu0 %v339
    %448 = vmatpush1.bf16.msra.mxu0 %v338
    %449 = vmatprep.mubr.bf16.mxu0 %v416
    %450 = vmatmul.mubr.bf16.gmra.mrb[0].mxu0 %v415
    %v451 = vpop.f32.mrb[0].mxu0
    %v452 = vadd.f32 %v203, %v451
    %v453 = vpop.f32.mrb[0].mxu0
    %v454 = vadd.f32 %v207, %v453
    %v455 = vpop.f32.mrb[0].mxu0
    %v456 = vpop.f32.mrb[0].mxu0
    %457 = vdwg.mxu0
    %v458 = vmax.f32 %v452, 0.0
    %v459 = vmax.f32 %v454, 0.0
    %v460 = vpack.c.bf16 %v458, %v458
    %v461 = vpack.c.bf16 %v459, %v459
    %462 = vmatprep.subr.bf16.mxu0 %v309
    %463 = vmatpush1.bf16.msra.mxu0 %v308
    %464 = vmatprep.subr.bf16.mxu0 %v311
    %465 = vmatpush1.bf16.msra.mxu0 %v310
    %466 = vmatprep.subr.bf16.mxu0 %v313
    %467 = vmatpush1.bf16.msra.mxu0 %v312
    %468 = vmatprep.subr.bf16.mxu0 %v315
    %469 = vmatpush1.bf16.msra.mxu0 %v314
    %470 = vmatprep.subr.bf16.mxu0 %v317
    %471 = vmatpush1.bf16.msra.mxu0 %v316
    %472 = vmatprep.subr.bf16.mxu0 %v319
    %473 = vmatpush1.bf16.msra.mxu0 %v318
    %474 = vmatprep.subr.bf16.mxu0 %v321
    %475 = vmatpush1.bf16.msra.mxu0 %v320
    %476 = vmatprep.subr.bf16.mxu0 %v323
    %477 = vmatpush1.bf16.msra.mxu0 %v322
    %478 = vmatprep.subr.bf16.mxu0 %v325
    %479 = vmatpush1.bf16.msra.mxu0 %v324
    %480 = vmatprep.subr.bf16.mxu0 %v327
    %481 = vmatpush1.bf16.msra.mxu0 %v326
    %482 = vmatprep.subr.bf16.mxu0 %v329
    %483 = vmatpush1.bf16.msra.mxu0 %v328
    %484 = vmatprep.subr.bf16.mxu0 %v331
    %485 = vmatpush1.bf16.msra.mxu0 %v330
    %486 = vmatprep.subr.bf16.mxu0 %v333
    %487 = vmatpush1.bf16.msra.mxu0 %v332
    %488 = vmatprep.subr.bf16.mxu0 %v335
    %489 = vmatpush1.bf16.msra.mxu0 %v334
    %490 = vmatprep.subr.bf16.mxu0 %v337
    %491 = vmatpush1.bf16.msra.mxu0 %v336
    %492 = vmatprep.subr.bf16.mxu0 %v339
    %493 = vmatpush1.bf16.msra.mxu0 %v338
    %494 = vmatprep.mubr.bf16.mxu0 %v461
    %495 = vmatmul.mubr.bf16.gmra.mrb[0].mxu0 %v460
    %v496 = vpop.f32.mrb[0].mxu0
    %v497 = vadd.f32 %v203, %v496
    %v498 = vpop.f32.mrb[0].mxu0
    %v499 = vadd.f32 %v207, %v498
    %v500 = vpop.f32.mrb[0].mxu0
    %v501 = vpop.f32.mrb[0].mxu0
    %502 = vdwg.mxu0
    %v503 = vmax.f32 %v497, 0.0
    %v504 = vmax.f32 %v499, 0.0
    %v505 = vpack.c.bf16 %v503, %v503
    %v506 = vpack.c.bf16 %v504, %v504
    %507 = vmatprep.subr.bf16.mxu0 %v309
    %508 = vmatpush1.bf16.msra.mxu0 %v308
    %509 = vmatprep.subr.bf16.mxu0 %v311
    %510 = vmatpush1.bf16.msra.mxu0 %v310
    %511 = vmatprep.subr.bf16.mxu0 %v313
    %512 = vmatpush1.bf16.msra.mxu0 %v312
    %513 = vmatprep.subr.bf16.mxu0 %v315
    %514 = vmatpush1.bf16.msra.mxu0 %v314
    %515 = vmatprep.subr.bf16.mxu0 %v317
    %516 = vmatpush1.bf16.msra.mxu0 %v316
    %517 = vmatprep.subr.bf16.mxu0 %v319
    %518 = vmatpush1.bf16.msra.mxu0 %v318
    %519 = vmatprep.subr.bf16.mxu0 %v321
    %520 = vmatpush1.bf16.msra.mxu0 %v320
    %521 = vmatprep.subr.bf16.mxu0 %v323
    %522 = vmatpush1.bf16.msra.mxu0 %v322
    %523 = vmatprep.subr.bf16.mxu0 %v325
    %524 = vmatpush1.bf16.msra.mxu0 %v324
    %525 = vmatprep.subr.bf16.mxu0 %v327
    %526 = vmatpush1.bf16.msra.mxu0 %v326
    %527 = vmatprep.subr.bf16.mxu0 %v329
    %528 = vmatpush1.bf16.msra.mxu0 %v328
    %529 = vmatprep.subr.bf16.mxu0 %v331
    %530 = vmatpush1.bf16.msra.mxu0 %v330
    %531 = vmatprep.subr.bf16.mxu0 %v333
    %532 = vmatpush1.bf16.msra.mxu0 %v332
    %533 = vmatprep.subr.bf16.mxu0 %v335
    %534 = vmatpush1.bf16.msra.mxu0 %v334
    %535 = vmatprep.subr.bf16.mxu0 %v337
    %536 = vmatpush1.bf16.msra.mxu0 %v336
    %537 = vmatprep.subr.bf16.mxu0 %v339
    %538 = vmatpush1.bf16.msra.mxu0 %v338
    %539 = vmatprep.mubr.bf16.mxu0 %v506
    %540 = vmatmul.mubr.bf16.gmra.mrb[0].mxu0 %v505
    %v541 = vpop.f32.mrb[0].mxu0
    %v542 = vadd.f32 %v203, %v541
    %v543 = vpop.f32.mrb[0].mxu0
    %v544 = vadd.f32 %v207, %v543
    %v545 = vpop.f32.mrb[0].mxu0
    %v546 = vpop.f32.mrb[0].mxu0
    %547 = vdwg.mxu0
    %v548 = vmax.f32 %v542, 0.0
    %v549 = vmax.f32 %v544, 0.0
    %v550 = vpack.c.bf16 %v548, %v548
    %v551 = vpack.c.bf16 %v549, %v549
    %552 = vmatprep.subr.bf16.mxu0 %v309
    %553 = vmatpush1.bf16.msra.mxu0 %v308
    %554 = vmatprep.subr.bf16.mxu0 %v311
    %555 = vmatpush1.bf16.msra.mxu0 %v310
    %556 = vmatprep.subr.bf16.mxu0 %v313
    %557 = vmatpush1.bf16.msra.mxu0 %v312
    %558 = vmatprep.subr.bf16.mxu0 %v315
    %559 = vmatpush1.bf16.msra.mxu0 %v314
    %560 = vmatprep.subr.bf16.mxu0 %v317
    %561 = vmatpush1.bf16.msra.mxu0 %v316
    %562 = vmatprep.subr.bf16.mxu0 %v319
    %563 = vmatpush1.bf16.msra.mxu0 %v318
    %564 = vmatprep.subr.bf16.mxu0 %v321
    %565 = vmatpush1.bf16.msra.mxu0 %v320
    %566 = vmatprep.subr.bf16.mxu0 %v323
    %567 = vmatpush1.bf16.msra.mxu0 %v322
    %568 = vmatprep.subr.bf16.mxu0 %v325
    %569 = vmatpush1.bf16.msra.mxu0 %v324
    %570 = vmatprep.subr.bf16.mxu0 %v327
    %571 = vmatpush1.bf16.msra.mxu0 %v326
    %572 = vmatprep.subr.bf16.mxu0 %v329
    %573 = vmatpush1.bf16.msra.mxu0 %v328
    %574 = vmatprep.subr.bf16.mxu0 %v331
    %575 = vmatpush1.bf16.msra.mxu0 %v330
    %576 = vmatprep.subr.bf16.mxu0 %v333
    %577 = vmatpush1.bf16.msra.mxu0 %v332
    %578 = vmatprep.subr.bf16.mxu0 %v335
    %579 = vmatpush1.bf16.msra.mxu0 %v334
    %580 = vmatprep.subr.bf16.mxu0 %v337
    %581 = vmatpush1.bf16.msra.mxu0 %v336
    %582 = vmatprep.subr.bf16.mxu0 %v339
    %583 = vmatpush1.bf16.msra.mxu0 %v338
    %584 = vmatprep.mubr.bf16.mxu0 %v551
    %585 = vmatmul.mubr.bf16.gmra.mrb[0].mxu0 %v550
    %v586 = vpop.f32.mrb[0].mxu0
    %v587 = vadd.f32 %v203, %v586
    %v588 = vpop.f32.mrb[0].mxu0
    %v589 = vadd.f32 %v207, %v588
    %v590 = vpop.f32.mrb[0].mxu0
    %v591 = vpop.f32.mrb[0].mxu0
    %592 = vdwg.mxu0
    %v593 = vmax.f32 %v587, 0.0
    %v594 = vmax.f32 %v589, 0.0
    %v595 = vpack.c.bf16 %v593, %v593
    %v596 = vpack.c.bf16 %v594, %v594
    %597 = vmatprep.subr.bf16.mxu0 %v309
    %598 = vmatpush1.bf16.msra.mxu0 %v308
    %599 = vmatprep.subr.bf16.mxu0 %v311
    %600 = vmatpush1.bf16.msra.mxu0 %v310
    %601 = vmatprep.subr.bf16.mxu0 %v313
    %602 = vmatpush1.bf16.msra.mxu0 %v312
    %603 = vmatprep.subr.bf16.mxu0 %v315
    %604 = vmatpush1.bf16.msra.mxu0 %v314
    %605 = vmatprep.subr.bf16.mxu0 %v317
    %606 = vmatpush1.bf16.msra.mxu0 %v316
    %607 = vmatprep.subr.bf16.mxu0 %v319
    %608 = vmatpush1.bf16.msra.mxu0 %v318
    %609 = vmatprep.subr.bf16.mxu0 %v321
    %610 = vmatpush1.bf16.msra.mxu0 %v320
    %611 = vmatprep.subr.bf16.mxu0 %v323
    %612 = vmatpush1.bf16.msra.mxu0 %v322
    %613 = vmatprep.subr.bf16.mxu0 %v325
    %614 = vmatpush1.bf16.msra.mxu0 %v324
    %615 = vmatprep.subr.bf16.mxu0 %v327
    %616 = vmatpush1.bf16.msra.mxu0 %v326
    %617 = vmatprep.subr.bf16.mxu0 %v329
    %618 = vmatpush1.bf16.msra.mxu0 %v328
    %619 = vmatprep.subr.bf16.mxu0 %v331
    %620 = vmatpush1.bf16.msra.mxu0 %v330
    %621 = vmatprep.subr.bf16.mxu0 %v333
    %622 = vmatpush1.bf16.msra.mxu0 %v332
    %623 = vmatprep.subr.bf16.mxu0 %v335
    %624 = vmatpush1.bf16.msra.mxu0 %v334
    %625 = vmatprep.subr.bf16.mxu0 %v337
    %626 = vmatpush1.bf16.msra.mxu0 %v336
    %627 = vmatprep.subr.bf16.mxu0 %v339
    %628 = vmatpush1.bf16.msra.mxu0 %v338
    %629 = vmatprep.mubr.bf16.mxu0 %v596
    %630 = vmatmul.mubr.bf16.gmra.mrb[0].mxu0 %v595
    %v631 = vpop.f32.mrb[0].mxu0
    %v632 = vadd.f32 %v203, %v631
    %v633 = vpop.f32.mrb[0].mxu0
    %v634 = vadd.f32 %v207, %v633
    %v635 = vpop.f32.mrb[0].mxu0
    %v636 = vpop.f32.mrb[0].mxu0
    %637 = vdwg.mxu0
    %v638 = vmax.f32 %v632, 0.0
    %v639 = vmax.f32 %v634, 0.0
    %v640 = vpack.c.bf16 %v638, %v638
    %v641 = vpack.c.bf16 %v639, %v639
    %642 = vmatprep.subr.bf16.mxu0 %v309
    %643 = vmatpush1.bf16.msra.mxu0 %v308
    %644 = vmatprep.subr.bf16.mxu0 %v311
    %645 = vmatpush1.bf16.msra.mxu0 %v310
    %646 = vmatprep.subr.bf16.mxu0 %v313
    %647 = vmatpush1.bf16.msra.mxu0 %v312
    %648 = vmatprep.subr.bf16.mxu0 %v315
    %649 = vmatpush1.bf16.msra.mxu0 %v314
    %650 = vmatprep.subr.bf16.mxu0 %v317
    %651 = vmatpush1.bf16.msra.mxu0 %v316
    %652 = vmatprep.subr.bf16.mxu0 %v319
    %653 = vmatpush1.bf16.msra.mxu0 %v318
    %654 = vmatprep.subr.bf16.mxu0 %v321
    %655 = vmatpush1.bf16.msra.mxu0 %v320
    %656 = vmatprep.subr.bf16.mxu0 %v323
    %657 = vmatpush1.bf16.msra.mxu0 %v322
    %658 = vmatprep.subr.bf16.mxu0 %v325
    %659 = vmatpush1.bf16.msra.mxu0 %v324
    %660 = vmatprep.subr.bf16.mxu0 %v327
    %661 = vmatpush1.bf16.msra.mxu0 %v326
    %662 = vmatprep.subr.bf16.mxu0 %v329
    %663 = vmatpush1.bf16.msra.mxu0 %v328
    %664 = vmatprep.subr.bf16.mxu0 %v331
    %665 = vmatpush1.bf16.msra.mxu0 %v330
    %666 = vmatprep.subr.bf16.mxu0 %v333
    %667 = vmatpush1.bf16.msra.mxu0 %v332
    %668 = vmatprep.subr.bf16.mxu0 %v335
    %669 = vmatpush1.bf16.msra.mxu0 %v334
    %670 = vmatprep.subr.bf16.mxu0 %v337
    %671 = vmatpush1.bf16.msra.mxu0 %v336
    %672 = vmatprep.subr.bf16.mxu0 %v339
    %673 = vmatpush1.bf16.msra.mxu0 %v338
    %674 = vmatprep.mubr.bf16.mxu0 %v641
    %675 = vmatmul.mubr.bf16.gmra.mrb[0].mxu0 %v640
    %v676 = vpop.f32.mrb[0].mxu0
    %v677 = vadd.f32 %v203, %v676
    %v678 = vpop.f32.mrb[0].mxu0
    %v679 = vadd.f32 %v207, %v678
    %v680 = vpop.f32.mrb[0].mxu0
    %v681 = vpop.f32.mrb[0].mxu0
    %682 = vdwg.mxu0
    %v683 = vmax.f32 %v677, 0.0
    %v684 = vmax.f32 %v679, 0.0
    %v685 = vpack.c.bf16 %v683, %v683
    %v686 = vpack.c.bf16 %v684, %v684
    %687 = vmatprep.subr.bf16.mxu0 %v309
    %688 = vmatpush1.bf16.msra.mxu0 %v308
    %689 = vmatprep.subr.bf16.mxu0 %v311
    %690 = vmatpush1.bf16.msra.mxu0 %v310
    %691 = vmatprep.subr.bf16.mxu0 %v313
    %692 = vmatpush1.bf16.msra.mxu0 %v312
    %693 = vmatprep.subr.bf16.mxu0 %v315
    %694 = vmatpush1.bf16.msra.mxu0 %v314
    %695 = vmatprep.subr.bf16.mxu0 %v317
    %696 = vmatpush1.bf16.msra.mxu0 %v316
    %697 = vmatprep.subr.bf16.mxu0 %v319
    %698 = vmatpush1.bf16.msra.mxu0 %v318
    %699 = vmatprep.subr.bf16.mxu0 %v321
    %700 = vmatpush1.bf16.msra.mxu0 %v320
    %701 = vmatprep.subr.bf16.mxu0 %v323
    %702 = vmatpush1.bf16.msra.mxu0 %v322
    %703 = vmatprep.subr.bf16.mxu0 %v325
    %704 = vmatpush1.bf16.msra.mxu0 %v324
    %705 = vmatprep.subr.bf16.mxu0 %v327
    %706 = vmatpush1.bf16.msra.mxu0 %v326
    %707 = vmatprep.subr.bf16.mxu0 %v329
    %708 = vmatpush1.bf16.msra.mxu0 %v328
    %709 = vmatprep.subr.bf16.mxu0 %v331
    %710 = vmatpush1.bf16.msra.mxu0 %v330
    %711 = vmatprep.subr.bf16.mxu0 %v333
    %712 = vmatpush1.bf16.msra.mxu0 %v332
    %713 = vmatprep.subr.bf16.mxu0 %v335
    %714 = vmatpush1.bf16.msra.mxu0 %v334
    %715 = vmatprep.subr.bf16.mxu0 %v337
    %716 = vmatpush1.bf16.msra.mxu0 %v336
    %717 = vmatprep.subr.bf16.mxu0 %v339
    %718 = vmatpush1.bf16.msra.mxu0 %v338
    %719 = vmatprep.mubr.bf16.mxu0 %v686
    %720 = vmatmul.mubr.bf16.gmra.mrb[0].mxu0 %v685
    %v721 = vpop.f32.mrb[0].mxu0
    %v722 = vadd.f32 %v203, %v721
    %v723 = vpop.f32.mrb[0].mxu0
    %v724 = vadd.f32 %v207, %v723
    %v725 = vpop.f32.mrb[0].mxu0
    %v726 = vpop.f32.mrb[0].mxu0
    %727 = vdwg.mxu0
    %v728 = vmax.f32 %v722, 0.0
    %v729 = vmax.f32 %v724, 0.0
    %v730 = vpack.c.bf16 %v728, %v728
    %v731 = vpack.c.bf16 %v729, %v729
    %v732 = vld [vmem:[#allocation8] sm:$0xf]
    %v733 = vld [vmem:[#allocation8 + $0x4] sm:$0xf]
    %v734 = vld [vmem:[#allocation8 + $0x8] sm:$0xf]
    %v735 = vld [vmem:[#allocation8 + $0xc] sm:$0xf]
    %v736 = vld [vmem:[#allocation8 + $0x10] sm:$0xf]
    %v737 = vld [vmem:[#allocation8 + $0x14] sm:$0xf]
    %v738 = vld [vmem:[#allocation8 + $0x18] sm:$0xf]
    %v739 = vld [vmem:[#allocation8 + $0x1c] sm:$0xf]
    %v740 = vld [vmem:[#allocation8 + $0x20] sm:$0xf]
    %v741 = vld [vmem:[#allocation8 + $0x24] sm:$0xf]
    %v742 = vld [vmem:[#allocation8 + $0x28] sm:$0xf]
    %v743 = vld [vmem:[#allocation8 + $0x2c] sm:$0xf]
    %v744 = vld [vmem:[#allocation8 + $0x30] sm:$0xf]
    %v745 = vld [vmem:[#allocation8 + $0x34] sm:$0xf]
    %v746 = vld [vmem:[#allocation8 + $0x38] sm:$0xf]
    %v747 = vld [vmem:[#allocation8 + $0x3c] sm:$0xf]
    %v748 = vld [vmem:[#allocation8 + $0x40] sm:$0xf]
    %v749 = vld [vmem:[#allocation8 + $0x44] sm:$0xf]
    %v750 = vld [vmem:[#allocation8 + $0x48] sm:$0xf]
    %v751 = vld [vmem:[#allocation8 + $0x4c] sm:$0xf]
    %v752 = vld [vmem:[#allocation8 + $0x50] sm:$0xf]
    %v753 = vld [vmem:[#allocation8 + $0x54] sm:$0xf]
    %v754 = vld [vmem:[#allocation8 + $0x58] sm:$0xf]
    %v755 = vld [vmem:[#allocation8 + $0x5c] sm:$0xf]
    %v756 = vld [vmem:[#allocation8 + $0x60] sm:$0xf]
    %v757 = vld [vmem:[#allocation8 + $0x64] sm:$0xf]
    %v758 = vld [vmem:[#allocation8 + $0x68] sm:$0xf]
    %v759 = vld [vmem:[#allocation8 + $0x6c] sm:$0xf]
    %v760 = vld [vmem:[#allocation8 + $0x70] sm:$0xf]
    %v761 = vld [vmem:[#allocation8 + $0x74] sm:$0xf]
    %v762 = vld [vmem:[#allocation8 + $0x78] sm:$0xf]
    %v763 = vld [vmem:[#allocation8 + $0x7c] sm:$0xf]
    %v764 = vld [vmem:[%s6] sm:$0x1]
    %v766 = vlaneseq
    %v767 = vshrl.u32 %v766, 7
    %v768 = vsub.s32 0, %v767
    %v769 = vrot.slane %v764, %v768
    %v803 = vunpack.c.l.b16 %v732
    %v804 = vunpack.c.l.b16 %v733
    %v805 = vunpack.c.l.b16 %v734
    %v806 = vunpack.c.l.b16 %v735
    %v807 = vunpack.c.l.b16 %v736
    %v808 = vunpack.c.l.b16 %v737
    %v809 = vunpack.c.l.b16 %v738
    %v810 = vunpack.c.l.b16 %v739
    %v811 = vunpack.c.l.b16 %v740
    %v812 = vunpack.c.l.b16 %v741
    %v813 = vunpack.c.l.b16 %v742
    %v814 = vunpack.c.l.b16 %v743
    %v815 = vunpack.c.l.b16 %v744
    %v816 = vunpack.c.l.b16 %v745
    %v817 = vunpack.c.l.b16 %v746
    %v818 = vunpack.c.l.b16 %v747
    %v819 = vunpack.c.l.b16 %v748
    %v820 = vunpack.c.l.b16 %v749
    %v821 = vunpack.c.l.b16 %v750
    %v822 = vunpack.c.l.b16 %v751
    %v823 = vunpack.c.l.b16 %v752
    %v824 = vunpack.c.l.b16 %v753
    %v825 = vunpack.c.l.b16 %v754
    %v826 = vunpack.c.l.b16 %v755
    %v827 = vunpack.c.l.b16 %v756
    %v828 = vunpack.c.l.b16 %v757
    %v829 = vunpack.c.l.b16 %v758
    %v830 = vunpack.c.l.b16 %v759
    %v831 = vunpack.c.l.b16 %v760
    %v832 = vunpack.c.l.b16 %v761
    %v833 = vunpack.c.l.b16 %v762
    %v834 = vunpack.c.l.b16 %v763
    %v835 = vpack.c.b16 %v804, %v803
    %v836 = vpack.c.b16 %v806, %v805
    %v837 = vpack.c.b16 %v808, %v807
    %v838 = vpack.c.b16 %v810, %v809
    %v839 = vpack.c.b16 %v812, %v811
    %v840 = vpack.c.b16 %v814, %v813
    %v841 = vpack.c.b16 %v816, %v815
    %v842 = vpack.c.b16 %v818, %v817
    %v843 = vpack.c.b16 %v820, %v819
    %v844 = vpack.c.b16 %v822, %v821
    %v845 = vpack.c.b16 %v824, %v823
    %v846 = vpack.c.b16 %v826, %v825
    %v847 = vpack.c.b16 %v828, %v827
    %v848 = vpack.c.b16 %v830, %v829
    %v849 = vpack.c.b16 %v832, %v831
    %v850 = vpack.c.b16 %v834, %v833
    %867 = vmatprep.subr.bf16.mxu0 0
    %868 = vmatpush1.bf16.msra.mxu0 %v835
    %869 = vmatprep.subr.bf16.mxu0 0
    %870 = vmatpush1.bf16.msra.mxu0 %v836
    %871 = vmatprep.subr.bf16.mxu0 0
    %872 = vmatpush1.bf16.msra.mxu0 %v837
    %873 = vmatprep.subr.bf16.mxu0 0
    %874 = vmatpush1.bf16.msra.mxu0 %v838
    %875 = vmatprep.subr.bf16.mxu0 0
    %876 = vmatpush1.bf16.msra.mxu0 %v839
    %877 = vmatprep.subr.bf16.mxu0 0
    %878 = vmatpush1.bf16.msra.mxu0 %v840
    %879 = vmatprep.subr.bf16.mxu0 0
    %880 = vmatpush1.bf16.msra.mxu0 %v841
    %881 = vmatprep.subr.bf16.mxu0 0
    %882 = vmatpush1.bf16.msra.mxu0 %v842
    %883 = vmatprep.subr.bf16.mxu0 0
    %884 = vmatpush1.bf16.msra.mxu0 %v843
    %885 = vmatprep.subr.bf16.mxu0 0
    %886 = vmatpush1.bf16.msra.mxu0 %v844
    %887 = vmatprep.subr.bf16.mxu0 0
    %888 = vmatpush1.bf16.msra.mxu0 %v845
    %889 = vmatprep.subr.bf16.mxu0 0
    %890 = vmatpush1.bf16.msra.mxu0 %v846
    %891 = vmatprep.subr.bf16.mxu0 0
    %892 = vmatpush1.bf16.msra.mxu0 %v847
    %893 = vmatprep.subr.bf16.mxu0 0
    %894 = vmatpush1.bf16.msra.mxu0 %v848
    %895 = vmatprep.subr.bf16.mxu0 0
    %896 = vmatpush1.bf16.msra.mxu0 %v849
    %897 = vmatprep.subr.bf16.mxu0 0
    %898 = vmatpush1.bf16.msra.mxu0 %v850
    %899 = vmatprep.mubr.bf16.mxu0 %v731
    %900 = vmatmul.mubr.bf16.gmra.mrb[0].mxu0 %v730
    %v901 = vpop.f32.mrb[0].mxu0
    %v902 = vadd.f32 %v769, %v901
    %v903 = vpop.f32.mrb[0].mxu0
    %v904 = vpop.f32.mrb[0].mxu0
    %v905 = vpop.f32.mrb[0].mxu0
    %906 = vdwg.mxu0
    %v907 = vmax.f32 %v902, 0.0
    %908 = vst [vmem:[#allocation10] sm:$0xff] %v907
    // Predicated region
    $region46: #{mynet_forward.1} parent=1 // pred_check
      _
    $region47: #{mynet_forward.1} parent=1 // pred_check_branch
      %910 = sbr.rel (0) target = $region49
    $region48: #{mynet_forward.1} parent=1 // pred_region
      %s912 = ssub.s32 128, 128
      %913 = vsyncadd [#allocation4], %s912
      %s915 = sshll.u32 [#allocation10], 4
      %s916 = int_to_ptr.vmem [resolvable:$true] %s915
      %918 = dma.vmem_to_hbm [thread:$0]  %s916, 128, %s7, [#allocation4]
    $region49: #{mynet_forward.1} parent=1 // pred_fallthru
      _
    // Predicated region
    $region50: #{mynet_forward.1} parent=1 // pred_check
      _
    $region51: #{mynet_forward.1} parent=1 // pred_check_branch
      %920 = sbr.rel (0) target = $region53
    $region52: #{mynet_forward.1} parent=1 // pred_region
      %921 = dma.done [#allocation4], 128
    $region53: #{mynet_forward.1} parent=1 // pred_fallthru
      _
    %922 = vsyncpa [#allocation3], 1
    %923 = vsyncpa [#allocation6], 1
    %924 = vsyncpa [#allocation9], 1
    %925 = vsyncpa [#allocation4], 1

</llo_original>
